<compile_context>
chip_gen: v7x
topology: tpu7x:2x2x1
jax: 0.10.0
libtpu: 0.0.40
codegen_flags: <defaults>
</compile_context>

<pallas_src>
from functools import partial

import jax
import jax.numpy as jnp
from jax.experimental import pallas as pl
from jax.experimental.pallas import tpu as pltpu


def attention_kernel(num_head, dim_head, seq_len,
                     x_ref,        # (rows, Dpad)
                     wqkv_ref,     # (Dpad, 3*inner)   scale folded into Q part
                     bqkv_ref,     # (1, 3*inner)      V-bias section is zero
                     wo_ref,       # (inner, Dpad)
                     bo_ref,       # (1, Dpad)         includes bv @ Wo fold
                     o_ref):       # (rows, Dpad)
    rows = x_ref.shape[0]
    bb = rows // seq_len
    inner = num_head * dim_head

    x = x_ref[...]                                     # (rows, Dpad)

    # Fused QKV projection: one wide matmul + one broadcast bias add.
    qkv = jnp.dot(x, wqkv_ref[...], preferred_element_type=jnp.float32)
    qkv = qkv + bqkv_ref[...]                          # (rows, 3*inner) f32

    # Block-diagonal mask so rows only attend within their own batch element.
    if bb > 1:
        ri = jax.lax.broadcasted_iota(jnp.int32, (rows, rows), 0) // seq_len
        ci = jax.lax.broadcasted_iota(jnp.int32, (rows, rows), 1) // seq_len
        attn_bias = jnp.where(ri == ci, 0.0, -1e30).astype(jnp.float32)
    else:
        attn_bias = None

    # Per-head attention. num_head is small, so a static unrolled loop is fine;
    # for large H switch to lax.fori_loop(..., unroll=True) to bound vreg
    # live ranges.
    pv_heads = []
    for h in range(num_head):
        q0 = h * dim_head
        qh = qkv[:, q0:q0 + dim_head]                          # (rows, dh)
        kh = qkv[:, inner + q0:inner + q0 + dim_head]          # (rows, dh)
        vh = qkv[:, 2 * inner + q0:2 * inner + q0 + dim_head]  # (rows, dh)

        sim = jnp.dot(qh, kh.T, preferred_element_type=jnp.float32)  # (rows, rows)
        if attn_bias is not None:
            sim = sim + attn_bias
        sim = sim - jnp.max(sim, axis=-1, keepdims=True)              # stable softmax
        p = jnp.exp(sim)
        denom = jnp.sum(p, axis=-1, keepdims=True)                    # (rows, 1)

        pv = jnp.dot(p, vh, preferred_element_type=jnp.float32)       # (rows, dh)
        pv = pv * pl.reciprocal(denom, approx=False)                  # normalize small tensor
        pv_heads.append(pv)

    attn = jnp.concatenate(pv_heads, axis=-1)                         # (rows, inner)

    # Fused output projection across all heads/rows: one MXU pass.
    out = jnp.dot(attn, wo_ref[...], preferred_element_type=jnp.float32)
    out = out + bo_ref[...]
    o_ref[...] = out.astype(o_ref.dtype)


def attention(x, params, *, num_head, dim_head, block_b=None):
    B, T, D = x.shape
    inner = num_head * dim_head
    scale = dim_head ** (-0.5)

    if block_b is None:
        # >=2 grid steps when possible so both v7x TensorCores get work.
        block_b = max(1, B // 2)
    assert B % block_b == 0, "block_b must divide B"
    rows_per_block = block_b * T
    assert rows_per_block % 8 == 0, "block rows must be a multiple of 8 (f32 sublane)"

    wqkv = params["wqkv"]                 # (D, 3*inner), pre-transposed vs PyTorch
    bqkv = params["bqkv"]                 # (3*inner,)
    wo = params["wo"]                     # (inner, D)
    bo = params["bo"]                     # (D,)

    wq, wk, wv = jnp.split(wqkv, 3, axis=-1)     # (D, inner) each
    bq, bk, bv = jnp.split(bqkv, 3, axis=-1)     # (inner,)   each

    # Fold softmax scale into Q; fold V bias into the output bias
    # (softmax rows sum to 1 => each row of PV gets exactly +bv, i.e. +bv @ Wo).
    wqkv_f = jnp.concatenate([wq * scale, wk, wv], axis=-1)            # (D, 3*inner)
    bqkv_f = jnp.concatenate([bq * scale, bk, jnp.zeros_like(bv)])     # (3*inner,)
    bo_eff = bo + bv @ wo                                              # (D,)

    # Lane-dense padding of the feature dim to a multiple of 128 (zero columns,
    # exact). Wrapper-level only; result is sliced back to D on the host.
    Dp = max(128, ((D + 127) // 128) * 128)
    x_p = jnp.pad(x.reshape(B * T, D), ((0, 0), (0, Dp - D)))
    wqkv_p = jnp.pad(wqkv_f, ((0, Dp - D), (0, 0)))                    # (Dp, 3*inner)
    wo_p = jnp.pad(wo, ((0, 0), (0, Dp - D)))                          # (inner, Dp)
    bo_p = jnp.pad(bo_eff, (0, Dp - D)).reshape(1, Dp)                 # (1, Dp)
    bqkv_2d = bqkv_f.reshape(1, 3 * inner)                             # (1, 3*inner)

    weights = [wqkv_p, bqkv_2d, wo_p, bo_p]

    def const_spec(a):
        nd = a.ndim
        return pl.BlockSpec(a.shape, lambda i, _nd=nd: (0,) * _nd)

    out_p = pl.pallas_call(
        partial(attention_kernel, num_head, dim_head, T),
        out_shape=jax.ShapeDtypeStruct((B * T, Dp), x.dtype),
        grid=(B // block_b,),
        in_specs=[pl.BlockSpec((rows_per_block, Dp), lambda i: (i, 0))]
                 + [const_spec(a) for a in weights],
        out_specs=pl.BlockSpec((rows_per_block, Dp), lambda i: (i, 0)),
        compiler_params=pltpu.CompilerParams(
            dimension_semantics=("parallel",),
            vmem_limit_bytes=32 * 1024 * 1024,
        ),
    )(x_p, *weights)

    return out_p[:, :D].reshape(B, T, D)


# ---------------- pure-JAX reference for verification ----------------
def attention_ref(x, params, *, num_head, dim_head):
    B, T, D = x.shape
    inner = num_head * dim_head
    scale = dim_head ** (-0.5)

    qkv = x @ params["wqkv"] + params["bqkv"]
    q, k, v = jnp.split(qkv, 3, axis=-1)

    def heads(a):  # (B, T, inner) -> (B, H, T, dh)
        return a.reshape(B, T, num_head, dim_head).transpose(0, 2, 1, 3)

    q, k, v = heads(q), heads(k), heads(v)
    sim = jnp.einsum("bhqd,bhkd->bhqk", q, k) * scale
    p = jax.nn.softmax(sim, axis=-1)
    attn = jnp.einsum("bhqk,bhkd->bhqd", p, v)
    attn = attn.transpose(0, 2, 1, 3).reshape(B, T, inner)
    return attn @ params["wo"] + params["bo"]


def init_params(key, dim, num_head, dim_head):
    inner = num_head * dim_head
    ks = jax.random.split(key, 4)
    s = 0.05
    return {
        "wqkv": s * jax.random.normal(ks[0], (dim, 3 * inner), jnp.float32),
        "bqkv": s * jax.random.normal(ks[1], (3 * inner,), jnp.float32),
        "wo":   s * jax.random.normal(ks[2], (inner, dim), jnp.float32),
        "bo":   s * jax.random.normal(ks[3], (dim,), jnp.float32),
    }


if __name__ == "__main__":
    B, T, dim = 2, 8, 32
    num_head, dim_head = 4, 8

    key = jax.random.PRNGKey(0)
    kx, kp = jax.random.split(key)
    x = jax.random.normal(kx, (B, T, dim), jnp.float32)
    params = init_params(kp, dim, num_head, dim_head)

    ref = attention_ref(x, params, num_head=num_head, dim_head=dim_head)

    # Default tiling: block_b = B//2 -> 2 grid steps (one batch element each).
    out = attention(x, params, num_head=num_head, dim_head=dim_head)
    out = jax.block_until_ready(out)
    assert out.shape == (B, T, dim)
    assert jnp.allclose(out, ref, atol=1e-3, rtol=1e-3), "mismatch vs reference (block_b=1)"

    # Whole batch in one block: exercises the block-diagonal attention mask.
    out2 = attention(x, params, num_head=num_head, dim_head=dim_head, block_b=B)
    out2 = jax.block_until_ready(out2)
    assert jnp.allclose(out2, ref, atol=1e-3, rtol=1e-3), "mismatch vs reference (block_b=B)"

    print("KERNEL_OK")
</pallas_src>

<mosaic_0001>
module attributes {stable_mosaic.version = 11 : i64} {
  func.func @attention_kernel(%arg0: i32, %arg1: memref<8x128xf32, #tpu.memory_space<vmem>>, %arg2: memref<128x96xf32, #tpu.memory_space<vmem>>, %arg3: memref<1x96xf32, #tpu.memory_space<vmem>>, %arg4: memref<32x128xf32, #tpu.memory_space<vmem>>, %arg5: memref<1x128xf32, #tpu.memory_space<vmem>>, %arg6: memref<8x128xf32, #tpu.memory_space<vmem>>) attributes {dimension_semantics = [#tpu.dimension_semantics<parallel>], iteration_bounds = array<i64: 2>, scalar_prefetch = 0 : i64, scratch_operands = 0 : i64, tpu.core_type = #tpu.core_type<tc>, window_params = [{transform_indices = @transform_0, window_bounds = array<i64: 8, 128>}, {pipeline_mode = #tpu.pipeline_mode<synchronous>, transform_indices = @transform_1, window_bounds = array<i64: 128, 96>}, {pipeline_mode = #tpu.pipeline_mode<synchronous>, transform_indices = @transform_2, window_bounds = array<i64: 1, 96>}, {pipeline_mode = #tpu.pipeline_mode<synchronous>, transform_indices = @transform_3, window_bounds = array<i64: 32, 128>}, {pipeline_mode = #tpu.pipeline_mode<synchronous>, transform_indices = @transform_4, window_bounds = array<i64: 1, 128>}, {transform_indices = @transform_5, window_bounds = array<i64: 8, 128>}]} {
    %c0 = arith.constant 0 : index
    %c0_0 = arith.constant 0 : index
    %0 = vector.load %arg1[%c0, %c0_0] : memref<8x128xf32, #tpu.memory_space<vmem>>, vector<8x128xf32>
    %c0_1 = arith.constant 0 : index
    %c0_2 = arith.constant 0 : index
    %1 = vector.load %arg2[%c0_1, %c0_2] : memref<128x96xf32, #tpu.memory_space<vmem>>, vector<128x96xf32>
    %cst = arith.constant dense<0.000000e+00> : vector<8x96xf32>
    %2 = tpu.matmul %0, %1, %cst {dimension_numbers = #tpu.dot_dimension_numbers<[1], [0], [0], [1], [0, 0, 1, 1], [], []>} : vector<8x128xf32>, vector<128x96xf32>, vector<8x96xf32> -> vector<8x96xf32>
    %c0_3 = arith.constant 0 : index
    %c0_4 = arith.constant 0 : index
    %3 = vector.load %arg3[%c0_3, %c0_4] : memref<1x96xf32, #tpu.memory_space<vmem>>, vector<1x96xf32>
    %4 = vector.broadcast %3 : vector<1x96xf32> to vector<8x96xf32>
    %5 = arith.addf %2, %4 : vector<8x96xf32>
    %6 = vector.extract_strided_slice %5 {offsets = [0, 0], sizes = [8, 8], strides = [1, 1]} : vector<8x96xf32> to vector<8x8xf32>
    %7 = vector.extract_strided_slice %5 {offsets = [0, 32], sizes = [8, 8], strides = [1, 1]} : vector<8x96xf32> to vector<8x8xf32>
    %8 = vector.extract_strided_slice %5 {offsets = [0, 64], sizes = [8, 8], strides = [1, 1]} : vector<8x96xf32> to vector<8x8xf32>
    %9 = tpu.transpose %7, [1, 0] : vector<8x8xf32> -> vector<8x8xf32>
    %cst_5 = arith.constant dense<0.000000e+00> : vector<8x8xf32>
    %10 = tpu.matmul %6, %9, %cst_5 {dimension_numbers = #tpu.dot_dimension_numbers<[1], [0], [0], [1], [0, 0, 1, 1], [], []>} : vector<8x8xf32>, vector<8x8xf32>, vector<8x8xf32> -> vector<8x8xf32>
    %cst_6 = arith.constant dense<0xFF800000> : vector<8xf32>
    %11 = vector.multi_reduction <maximumf>, %10, %cst_6 [1] : vector<8x8xf32> to vector<8xf32>
    %12 = vector.shape_cast %11 : vector<8xf32> to vector<8x1xf32>
    %13 = vector.broadcast %12 : vector<8x1xf32> to vector<8x8xf32>
    %14 = arith.subf %10, %13 : vector<8x8xf32>
    %15 = math.exp %14 : vector<8x8xf32>
    %cst_7 = arith.constant dense<0.000000e+00> : vector<8xf32>
    %16 = vector.multi_reduction <add>, %15, %cst_7 [1] : vector<8x8xf32> to vector<8xf32>
    %17 = vector.shape_cast %16 : vector<8xf32> to vector<8x1xf32>
    %cst_8 = arith.constant dense<0.000000e+00> : vector<8x8xf32>
    %18 = tpu.matmul %15, %8, %cst_8 {dimension_numbers = #tpu.dot_dimension_numbers<[1], [0], [0], [1], [0, 0, 1, 1], [], []>} : vector<8x8xf32>, vector<8x8xf32>, vector<8x8xf32> -> vector<8x8xf32>
    %19 = tpu.reciprocal %17 : vector<8x1xf32> -> vector<8x1xf32>
    %20 = vector.broadcast %19 : vector<8x1xf32> to vector<8x8xf32>
    %21 = arith.mulf %18, %20 : vector<8x8xf32>
    %22 = vector.extract_strided_slice %5 {offsets = [0, 8], sizes = [8, 8], strides = [1, 1]} : vector<8x96xf32> to vector<8x8xf32>
    %23 = vector.extract_strided_slice %5 {offsets = [0, 40], sizes = [8, 8], strides = [1, 1]} : vector<8x96xf32> to vector<8x8xf32>
    %24 = vector.extract_strided_slice %5 {offsets = [0, 72], sizes = [8, 8], strides = [1, 1]} : vector<8x96xf32> to vector<8x8xf32>
    %25 = tpu.transpose %23, [1, 0] : vector<8x8xf32> -> vector<8x8xf32>
    %cst_9 = arith.constant dense<0.000000e+00> : vector<8x8xf32>
    %26 = tpu.matmul %22, %25, %cst_9 {dimension_numbers = #tpu.dot_dimension_numbers<[1], [0], [0], [1], [0, 0, 1, 1], [], []>} : vector<8x8xf32>, vector<8x8xf32>, vector<8x8xf32> -> vector<8x8xf32>
    %cst_10 = arith.constant dense<0xFF800000> : vector<8xf32>
    %27 = vector.multi_reduction <maximumf>, %26, %cst_10 [1] : vector<8x8xf32> to vector<8xf32>
    %28 = vector.shape_cast %27 : vector<8xf32> to vector<8x1xf32>
    %29 = vector.broadcast %28 : vector<8x1xf32> to vector<8x8xf32>
    %30 = arith.subf %26, %29 : vector<8x8xf32>
    %31 = math.exp %30 : vector<8x8xf32>
    %cst_11 = arith.constant dense<0.000000e+00> : vector<8xf32>
    %32 = vector.multi_reduction <add>, %31, %cst_11 [1] : vector<8x8xf32> to vector<8xf32>
    %33 = vector.shape_cast %32 : vector<8xf32> to vector<8x1xf32>
    %cst_12 = arith.constant dense<0.000000e+00> : vector<8x8xf32>
    %34 = tpu.matmul %31, %24, %cst_12 {dimension_numbers = #tpu.dot_dimension_numbers<[1], [0], [0], [1], [0, 0, 1, 1], [], []>} : vector<8x8xf32>, vector<8x8xf32>, vector<8x8xf32> -> vector<8x8xf32>
    %35 = tpu.reciprocal %33 : vector<8x1xf32> -> vector<8x1xf32>
    %36 = vector.broadcast %35 : vector<8x1xf32> to vector<8x8xf32>
    %37 = arith.mulf %34, %36 : vector<8x8xf32>
    %38 = vector.extract_strided_slice %5 {offsets = [0, 16], sizes = [8, 8], strides = [1, 1]} : vector<8x96xf32> to vector<8x8xf32>
    %39 = vector.extract_strided_slice %5 {offsets = [0, 48], sizes = [8, 8], strides = [1, 1]} : vector<8x96xf32> to vector<8x8xf32>
    %40 = vector.extract_strided_slice %5 {offsets = [0, 80], sizes = [8, 8], strides = [1, 1]} : vector<8x96xf32> to vector<8x8xf32>
    %41 = tpu.transpose %39, [1, 0] : vector<8x8xf32> -> vector<8x8xf32>
    %cst_13 = arith.constant dense<0.000000e+00> : vector<8x8xf32>
    %42 = tpu.matmul %38, %41, %cst_13 {dimension_numbers = #tpu.dot_dimension_numbers<[1], [0], [0], [1], [0, 0, 1, 1], [], []>} : vector<8x8xf32>, vector<8x8xf32>, vector<8x8xf32> -> vector<8x8xf32>
    %cst_14 = arith.constant dense<0xFF800000> : vector<8xf32>
    %43 = vector.multi_reduction <maximumf>, %42, %cst_14 [1] : vector<8x8xf32> to vector<8xf32>
    %44 = vector.shape_cast %43 : vector<8xf32> to vector<8x1xf32>
    %45 = vector.broadcast %44 : vector<8x1xf32> to vector<8x8xf32>
    %46 = arith.subf %42, %45 : vector<8x8xf32>
    %47 = math.exp %46 : vector<8x8xf32>
    %cst_15 = arith.constant dense<0.000000e+00> : vector<8xf32>
    %48 = vector.multi_reduction <add>, %47, %cst_15 [1] : vector<8x8xf32> to vector<8xf32>
    %49 = vector.shape_cast %48 : vector<8xf32> to vector<8x1xf32>
    %cst_16 = arith.constant dense<0.000000e+00> : vector<8x8xf32>
    %50 = tpu.matmul %47, %40, %cst_16 {dimension_numbers = #tpu.dot_dimension_numbers<[1], [0], [0], [1], [0, 0, 1, 1], [], []>} : vector<8x8xf32>, vector<8x8xf32>, vector<8x8xf32> -> vector<8x8xf32>
    %51 = tpu.reciprocal %49 : vector<8x1xf32> -> vector<8x1xf32>
    %52 = vector.broadcast %51 : vector<8x1xf32> to vector<8x8xf32>
    %53 = arith.mulf %50, %52 : vector<8x8xf32>
    %54 = vector.extract_strided_slice %5 {offsets = [0, 24], sizes = [8, 8], strides = [1, 1]} : vector<8x96xf32> to vector<8x8xf32>
    %55 = vector.extract_strided_slice %5 {offsets = [0, 56], sizes = [8, 8], strides = [1, 1]} : vector<8x96xf32> to vector<8x8xf32>
    %56 = vector.extract_strided_slice %5 {offsets = [0, 88], sizes = [8, 8], strides = [1, 1]} : vector<8x96xf32> to vector<8x8xf32>
    %57 = tpu.transpose %55, [1, 0] : vector<8x8xf32> -> vector<8x8xf32>
    %cst_17 = arith.constant dense<0.000000e+00> : vector<8x8xf32>
    %58 = tpu.matmul %54, %57, %cst_17 {dimension_numbers = #tpu.dot_dimension_numbers<[1], [0], [0], [1], [0, 0, 1, 1], [], []>} : vector<8x8xf32>, vector<8x8xf32>, vector<8x8xf32> -> vector<8x8xf32>
    %cst_18 = arith.constant dense<0xFF800000> : vector<8xf32>
    %59 = vector.multi_reduction <maximumf>, %58, %cst_18 [1] : vector<8x8xf32> to vector<8xf32>
    %60 = vector.shape_cast %59 : vector<8xf32> to vector<8x1xf32>
    %61 = vector.broadcast %60 : vector<8x1xf32> to vector<8x8xf32>
    %62 = arith.subf %58, %61 : vector<8x8xf32>
    %63 = math.exp %62 : vector<8x8xf32>
    %cst_19 = arith.constant dense<0.000000e+00> : vector<8xf32>
    %64 = vector.multi_reduction <add>, %63, %cst_19 [1] : vector<8x8xf32> to vector<8xf32>
    %65 = vector.shape_cast %64 : vector<8xf32> to vector<8x1xf32>
    %cst_20 = arith.constant dense<0.000000e+00> : vector<8x8xf32>
    %66 = tpu.matmul %63, %56, %cst_20 {dimension_numbers = #tpu.dot_dimension_numbers<[1], [0], [0], [1], [0, 0, 1, 1], [], []>} : vector<8x8xf32>, vector<8x8xf32>, vector<8x8xf32> -> vector<8x8xf32>
    %67 = tpu.reciprocal %65 : vector<8x1xf32> -> vector<8x1xf32>
    %68 = vector.broadcast %67 : vector<8x1xf32> to vector<8x8xf32>
    %69 = arith.mulf %66, %68 : vector<8x8xf32>
    %70 = tpu.concatenate %21, %37, %53, %69 in 1 : vector<8x8xf32>, vector<8x8xf32>, vector<8x8xf32>, vector<8x8xf32> -> vector<8x32xf32>
    %c0_21 = arith.constant 0 : index
    %c0_22 = arith.constant 0 : index
    %71 = vector.load %arg4[%c0_21, %c0_22] : memref<32x128xf32, #tpu.memory_space<vmem>>, vector<32x128xf32>
    %cst_23 = arith.constant dense<0.000000e+00> : vector<8x128xf32>
    %72 = tpu.matmul %70, %71, %cst_23 {dimension_numbers = #tpu.dot_dimension_numbers<[1], [0], [0], [1], [0, 0, 1, 1], [], []>} : vector<8x32xf32>, vector<32x128xf32>, vector<8x128xf32> -> vector<8x128xf32>
    %c0_24 = arith.constant 0 : index
    %c0_25 = arith.constant 0 : index
    %73 = vector.load %arg5[%c0_24, %c0_25] : memref<1x128xf32, #tpu.memory_space<vmem>>, vector<1x128xf32>
    %74 = vector.broadcast %73 : vector<1x128xf32> to vector<8x128xf32>
    %75 = arith.addf %72, %74 : vector<8x128xf32>
    %c0_26 = arith.constant 0 : index
    %c0_27 = arith.constant 0 : index
    %76 = vector.load %arg6[%c0_26, %c0_27] : memref<8x128xf32, #tpu.memory_space<vmem>>, vector<8x128xf32>
    tpu.vector_store %arg6[%c0_26, %c0_27], %75 {strides = array<i32>} : memref<8x128xf32, #tpu.memory_space<vmem>>, vector<8x128xf32>,
    return
  }
  func.func @transform_0(%arg0: i32) -> (i32, i32) {
    %c0_i32 = arith.constant 0 : i32
    %c0_i32_0 = arith.constant 0 : i32
    return %arg0, %c0_i32 : i32, i32
  }
  func.func @transform_1(%arg0: i32) -> (i32, i32) {
    %c0_i32 = arith.constant 0 : i32
    %c0_i32_0 = arith.constant 0 : i32
    %c0_i32_1 = arith.constant 0 : i32
    return %c0_i32, %c0_i32_0 : i32, i32
  }
  func.func @transform_2(%arg0: i32) -> (i32, i32) {
    %c0_i32 = arith.constant 0 : i32
    %c0_i32_0 = arith.constant 0 : i32
    %c0_i32_1 = arith.constant 0 : i32
    return %c0_i32, %c0_i32_0 : i32, i32
  }
  func.func @transform_3(%arg0: i32) -> (i32, i32) {
    %c0_i32 = arith.constant 0 : i32
    %c0_i32_0 = arith.constant 0 : i32
    %c0_i32_1 = arith.constant 0 : i32
    return %c0_i32, %c0_i32_0 : i32, i32
  }
  func.func @transform_4(%arg0: i32) -> (i32, i32) {
    %c0_i32 = arith.constant 0 : i32
    %c0_i32_0 = arith.constant 0 : i32
    %c0_i32_1 = arith.constant 0 : i32
    return %c0_i32, %c0_i32_0 : i32, i32
  }
  func.func @transform_5(%arg0: i32) -> (i32, i32) {
    %c0_i32 = arith.constant 0 : i32
    %c0_i32_0 = arith.constant 0 : i32
    return %arg0, %c0_i32 : i32, i32
  }
}

</mosaic_0001>

<llo_original>
// kernel: tpu_custom_call.1
$region0: #{tpu_custom_call.1}
  #allocation0 [shape = 'u32[]', space=smem, size = 0x4, offset = 0x4, fixed_abs, tag = 'smem constant byte address 0x4 - core index']
  #allocation1 [shape = 'u32[144,128]{1,0:T(1,128)}', space=vmem, size = 0x12000, scoped, tag = 'internal scratch']
  %s0 = inlined_call_operand.vmem [shape: f32[16,128], index: 0, kind: input, shape index: {}]
  %s1 = inlined_call_operand.vmem [shape: f32[128,96], index: 1, kind: input, shape index: {}]
  %s2 = inlined_call_operand.vmem [shape: f32[1,96], index: 2, kind: input, shape index: {}]
  %s3 = inlined_call_operand.vmem [shape: f32[32,128], index: 3, kind: input, shape index: {}]
  %s4 = inlined_call_operand.vmem [shape: f32[1,128], index: 4, kind: input, shape index: {}]
  %s5 = inlined_call_operand.hbm [shape: f32[16,128], index: 5, kind: output, shape index: {}]
  %s6 = sld [smem:[#allocation0]]
  $region53: #{tpu_custom_call.1} parent=0
    _
  %s8 = ssub.s32 1, %s6
  %s9 = scalar_select 0, %s8, %s6
  $region1: #{tpu_custom_call.1} parent=0
    #allocation2 [shape = 'u8[8192]{0}', space=vmem, size = 0x2000, scoped, tag = 'output window, operand 0']
    #allocation3 [shape = 's32[2]{0}', space=sflag, size = 0x8, scoped, tag = 'scoped memory for tpu_custom_call.1']
    %10 = vsyncpa [#allocation3], 0
    %s11 = scalar_lea.sflag [#allocation3], 1
    %12 = vsyncpa %s11, 0
    loop: start=0, step=1, limit=4
    $region2: #{tpu_custom_call.1} parent=1 // loop_pre_header
      _
    $region3: #{tpu_custom_call.1} parent=1 // loop_header
      %s14 = sphi 0, %s18
      %p15 = scmp.ge.s32.totalorder %s14, 4
      %s24 = sphi 0, %s26
      %s27 = sphi 0, %s24
      %s28 = sphi 0, %s27
      %s44 = sphi 0, %s28
      %s48 = sphi 0, %s48
      %s50 = sphi 0, %s48
      %s51 = sphi 0, %s50
      %s65 = sphi 0, %s51
      %s69 = sphi 0, %s69
      %s71 = sphi 0, %s69
      %s72 = sphi 0, %s71
      %s86 = sphi 0, %s72
      %s90 = sphi 0, %s90
      %s92 = sphi 0, %s90
      %s93 = sphi 0, %s92
      %s107 = sphi 0, %s93
      %s111 = sphi 0, %s111
      %s113 = sphi 0, %s111
      %s114 = sphi 0, %s113
      %s128 = sphi 0, %s114
      %s134 = sphi 0, %s136
      %s137 = sphi 0, %s134
      %s138 = sphi 0, %s137
      %s154 = sphi 0, %s138
    $region4: #{tpu_custom_call.1} parent=1 // loop_header_branch
      %17 = sbr.rel (%p15) target = $region8
    $region5: #{tpu_custom_call.1} parent=1 // loop_body
      %s19 = ssub.s32 %s14, 1
      %s20 = ssub.s32 %s14, 2
      %s21 = sadd.s32 %s14, 1
      %s22 = ssub.s32 %s14, %s21
      %p23 = scmp.eq.s32.totalorder %s22, 0
      %s25 = sadd.s32 %s24, 1
      %s26 = scalar_select %p23, %s24, %s25
      %p29 = pneg %p23
      %p30 = scmp.eq.s32.totalorder %s14, 1
      %p31 = por %p29, %p30
      %p32 = scmp.ne.s32.totalorder %s24, %s27
      %p33 = scmp.eq.s32.totalorder %s14, 0
      %p34 = por %p32, %p33
      %p35 = scmp.ne.s32.totalorder %s24, %s27
      %p36 = scmp.eq.s32.totalorder %s19, 1
      %p37 = por %p35, %p36
      %p38 = scmp.ne.s32.totalorder %s27, %s28
      %p39 = scmp.eq.s32.totalorder %s19, 0
      %p40 = por %p38, %p39
      %p41 = scmp.ne.s32.totalorder %s27, %s28
      %p42 = scmp.eq.s32.totalorder %s20, 1
      %p43 = por %p41, %p42
      %p45 = scmp.ne.s32.totalorder %s28, %s44
      %p46 = scmp.eq.s32.totalorder %s20, 0
      %p47 = por %p45, %p46
      %s49 = sadd.s32 %s48, 1
      %p52 = scmp.eq.s32.totalorder %s14, 1
      %p53 = scmp.ne.s32.totalorder %s48, %s50
      %p54 = scmp.eq.s32.totalorder %s14, 0
      %p55 = por %p53, %p54
      %p56 = scmp.ne.s32.totalorder %s48, %s50
      %p57 = scmp.eq.s32.totalorder %s19, 1
      %p58 = por %p56, %p57
      %p59 = scmp.ne.s32.totalorder %s50, %s51
      %p60 = scmp.eq.s32.totalorder %s19, 0
      %p61 = por %p59, %p60
      %p62 = scmp.ne.s32.totalorder %s50, %s51
      %p63 = scmp.eq.s32.totalorder %s20, 1
      %p64 = por %p62, %p63
      %p66 = scmp.ne.s32.totalorder %s51, %s65
      %p67 = scmp.eq.s32.totalorder %s20, 0
      %p68 = por %p66, %p67
      %s70 = sadd.s32 %s69, 1
      %p73 = scmp.eq.s32.totalorder %s14, 1
      %p74 = scmp.ne.s32.totalorder %s69, %s71
      %p75 = scmp.eq.s32.totalorder %s14, 0
      %p76 = por %p74, %p75
      %p77 = scmp.ne.s32.totalorder %s69, %s71
      %p78 = scmp.eq.s32.totalorder %s19, 1
      %p79 = por %p77, %p78
      %p80 = scmp.ne.s32.totalorder %s71, %s72
      %p81 = scmp.eq.s32.totalorder %s19, 0
      %p82 = por %p80, %p81
      %p83 = scmp.ne.s32.totalorder %s71, %s72
      %p84 = scmp.eq.s32.totalorder %s20, 1
      %p85 = por %p83, %p84
      %p87 = scmp.ne.s32.totalorder %s72, %s86
      %p88 = scmp.eq.s32.totalorder %s20, 0
      %p89 = por %p87, %p88
      %s91 = sadd.s32 %s90, 1
      %p94 = scmp.eq.s32.totalorder %s14, 1
      %p95 = scmp.ne.s32.totalorder %s90, %s92
      %p96 = scmp.eq.s32.totalorder %s14, 0
      %p97 = por %p95, %p96
      %p98 = scmp.ne.s32.totalorder %s90, %s92
      %p99 = scmp.eq.s32.totalorder %s19, 1
      %p100 = por %p98, %p99
      %p101 = scmp.ne.s32.totalorder %s92, %s93
      %p102 = scmp.eq.s32.totalorder %s19, 0
      %p103 = por %p101, %p102
      %p104 = scmp.ne.s32.totalorder %s92, %s93
      %p105 = scmp.eq.s32.totalorder %s20, 1
      %p106 = por %p104, %p105
      %p108 = scmp.ne.s32.totalorder %s93, %s107
      %p109 = scmp.eq.s32.totalorder %s20, 0
      %p110 = por %p108, %p109
      %s112 = sadd.s32 %s111, 1
      %p115 = scmp.eq.s32.totalorder %s14, 1
      %p116 = scmp.ne.s32.totalorder %s111, %s113
      %p117 = scmp.eq.s32.totalorder %s14, 0
      %p118 = por %p116, %p117
      %p119 = scmp.ne.s32.totalorder %s111, %s113
      %p120 = scmp.eq.s32.totalorder %s19, 1
      %p121 = por %p119, %p120
      %p122 = scmp.ne.s32.totalorder %s113, %s114
      %p123 = scmp.eq.s32.totalorder %s19, 0
      %p124 = por %p122, %p123
      %p125 = scmp.ne.s32.totalorder %s113, %s114
      %p126 = scmp.eq.s32.totalorder %s20, 1
      %p127 = por %p125, %p126
      %p129 = scmp.ne.s32.totalorder %s114, %s128
      %p130 = scmp.eq.s32.totalorder %s20, 0
      %p131 = por %p129, %p130
      %s132 = ssub.s32 %s14, %s21
      %p133 = scmp.eq.s32.totalorder %s132, 0
      %s135 = sadd.s32 %s134, 1
      %s136 = scalar_select %p133, %s134, %s135
      %p139 = pneg %p133
      %p140 = scmp.eq.s32.totalorder %s14, 1
      %p141 = por %p139, %p140
      %p142 = scmp.ne.s32.totalorder %s134, %s137
      %p143 = scmp.eq.s32.totalorder %s14, 0
      %p144 = por %p142, %p143
      %p145 = scmp.ne.s32.totalorder %s134, %s137
      %p146 = scmp.eq.s32.totalorder %s19, 1
      %p147 = por %p145, %p146
      %p148 = scmp.ne.s32.totalorder %s137, %s138
      %p149 = scmp.eq.s32.totalorder %s19, 0
      %p150 = por %p148, %p149
      %p151 = scmp.ne.s32.totalorder %s137, %s138
      %p152 = scmp.eq.s32.totalorder %s20, 1
      %p153 = por %p151, %p152
      %p155 = scmp.ne.s32.totalorder %s138, %s154
      %p156 = scmp.eq.s32.totalorder %s20, 0
      %p157 = por %p155, %p156
      %p158 = scmp.le.s32.totalorder 1, %s14
      %p159 = scmp.lt.s32.totalorder %s14, 3
      %p160 = pnand %p158, %p159
      %p161 = pneg %p160
      // Predicated region
      $region9: #{tpu_custom_call.1} parent=5 // pred_check
        _
      $region10: #{tpu_custom_call.1} parent=5 // pred_check_branch
        %163 = sbr.rel (%p160) target = $region12
      $region11: #{tpu_custom_call.1} parent=5 // pred_region
        %s164 = ssub.s32 %s14, 1
        // Predicated region
        $region13: #{tpu_custom_call.1} parent=11 // pred_check
          %p165 = pneg %p61
        $region14: #{tpu_custom_call.1} parent=11 // pred_check_branch
          %167 = sbr.rel (%p165) target = $region16
        $region15: #{tpu_custom_call.1} parent=11 // pred_region
          _
        $region16: #{tpu_custom_call.1} parent=11 // pred_fallthru
          _
        // Predicated region
        $region17: #{tpu_custom_call.1} parent=11 // pred_check
          %p168 = pneg %p82
        $region18: #{tpu_custom_call.1} parent=11 // pred_check_branch
          %170 = sbr.rel (%p168) target = $region20
        $region19: #{tpu_custom_call.1} parent=11 // pred_region
          _
        $region20: #{tpu_custom_call.1} parent=11 // pred_fallthru
          _
        // Predicated region
        $region21: #{tpu_custom_call.1} parent=11 // pred_check
          %p171 = pneg %p103
        $region22: #{tpu_custom_call.1} parent=11 // pred_check_branch
          %173 = sbr.rel (%p171) target = $region24
        $region23: #{tpu_custom_call.1} parent=11 // pred_region
          _
        $region24: #{tpu_custom_call.1} parent=11 // pred_fallthru
          _
        // Predicated region
        $region25: #{tpu_custom_call.1} parent=11 // pred_check
          %p174 = pneg %p124
        $region26: #{tpu_custom_call.1} parent=11 // pred_check_branch
          %176 = sbr.rel (%p174) target = $region28
        $region27: #{tpu_custom_call.1} parent=11 // pred_region
          _
        $region28: #{tpu_custom_call.1} parent=11 // pred_fallthru
          _
      $region12: #{tpu_custom_call.1} parent=5 // pred_fallthru
        _
      %p177 = scmp.lt.s32.totalorder %s14, 2
      // Predicated region
      $region29: #{tpu_custom_call.1} parent=5 // pred_check
        %p178 = pneg %p177
      $region30: #{tpu_custom_call.1} parent=5 // pred_check_branch
        %180 = sbr.rel (%p178) target = $region32
      $region31: #{tpu_custom_call.1} parent=5 // pred_region
        // Predicated region
        $region33: #{tpu_custom_call.1} parent=31 // pred_check
          %p181 = pneg %p34
        $region34: #{tpu_custom_call.1} parent=31 // pred_check_branch
          %183 = sbr.rel (%p181) target = $region36
        $region35: #{tpu_custom_call.1} parent=31 // pred_region
          %p184 = scmp.lt.s32.totalorder %s14, 1
          %s185 = scalar_select %p184, %s14, 1
          %s186 = smul.addr %s185, 8
          %s187 = scalar_lea.vmem %s0, %s186
        $region36: #{tpu_custom_call.1} parent=31 // pred_fallthru
          _
      $region32: #{tpu_custom_call.1} parent=5 // pred_fallthru
        _
      %p188 = scmp.le.s32.totalorder 1, %s14
      %p189 = scmp.lt.s32.totalorder %s14, 3
      %p190 = pnand %p188, %p189
      %p191 = pneg %p190
      // Predicated region
      $region37: #{tpu_custom_call.1} parent=5 // pred_check
        _
      $region38: #{tpu_custom_call.1} parent=5 // pred_check_branch
        %193 = sbr.rel (%p190) target = $region40
      $region39: #{tpu_custom_call.1} parent=5 // pred_region
        %s194 = ssub.s32 %s14, 1
        %p195 = scmp.lt.s32.totalorder %s19, 1
        %s196 = scalar_select %p195, %s19, 1
        %s197 = smul.addr %s196, 8
        %s198 = scalar_lea.vmem %s0, %s197
        %p199 = pneg %p40
        %p200 = pneg %p37
        %p201 = pneg %p61
        %p202 = pneg %p58
        %p203 = pneg %p82
        %p204 = pneg %p79
        %p205 = pneg %p103
        %p206 = pneg %p100
        %p207 = pneg %p124
        %p208 = pneg %p121
        %p209 = pneg %p150
        %p210 = pneg %p147
        %s211 = sand.u32 %s137, 1
        %s212 = scalar_lea.sflag [#allocation3], %s211
        %s213 = sand.u32 %s137, 1
        %s214 = smul.addr %s213, 8
        %s215 = scalar_lea.vmem [#allocation2], %s214
        %p216 = scmp.lt.s32.totalorder %s19, 1
        %s217 = scalar_select %p216, %s19, 1
        %s218 = smul.addr %s217, 8
        %s219 = scalar_lea.vmem %s0, %s218
        %v220 = vld [vmem:[%s219] sm:$0xff]
        %v221 = vld [vmem:[%s1] sm:$0xff]
        %v222 = vld [vmem:[%s1 + $0x8] sm:$0xff]
        %v223 = vld [vmem:[%s1 + $0x10] sm:$0xff]
        %v224 = vld [vmem:[%s1 + $0x18] sm:$0xff]
        %v225 = vld [vmem:[%s1 + $0x20] sm:$0xff]
        %v226 = vld [vmem:[%s1 + $0x28] sm:$0xff]
        %v227 = vld [vmem:[%s1 + $0x30] sm:$0xff]
        %v228 = vld [vmem:[%s1 + $0x38] sm:$0xff]
        %v229 = vld [vmem:[%s1 + $0x40] sm:$0xff]
        %v230 = vld [vmem:[%s1 + $0x48] sm:$0xff]
        %v231 = vld [vmem:[%s1 + $0x50] sm:$0xff]
        %v232 = vld [vmem:[%s1 + $0x58] sm:$0xff]
        %v233 = vld [vmem:[%s1 + $0x60] sm:$0xff]
        %v234 = vld [vmem:[%s1 + $0x68] sm:$0xff]
        %v235 = vld [vmem:[%s1 + $0x70] sm:$0xff]
        %v236 = vld [vmem:[%s1 + $0x78] sm:$0xff]
        %v237 = vld [vmem:[%s2] sm:$0x1]
        %v239 = vlaneseq
        %v240 = vshrl.u32 %v239, 7
        %v241 = vsub.s32 0, %v240
        %v242 = vrot.slane %v237, %v241
        %244 = vmatprep.subr.mxu0 0.0
        %245 = vmatpush1.msra.mxu0 %v221
        %246 = vmatprep.subr.mxu0 0.0
        %247 = vmatpush1.msra.mxu0 %v222
        %248 = vmatprep.subr.mxu0 0.0
        %249 = vmatpush1.msra.mxu0 %v223
        %250 = vmatprep.subr.mxu0 0.0
        %251 = vmatpush1.msra.mxu0 %v224
        %252 = vmatprep.subr.mxu0 0.0
        %253 = vmatpush1.msra.mxu0 %v225
        %254 = vmatprep.subr.mxu0 0.0
        %255 = vmatpush1.msra.mxu0 %v226
        %256 = vmatprep.subr.mxu0 0.0
        %257 = vmatpush1.msra.mxu0 %v227
        %258 = vmatprep.subr.mxu0 0.0
        %259 = vmatpush1.msra.mxu0 %v228
        %260 = vmatprep.subr.mxu0 0.0
        %261 = vmatpush1.msra.mxu0 %v229
        %262 = vmatprep.subr.mxu0 0.0
        %263 = vmatpush1.msra.mxu0 %v230
        %264 = vmatprep.subr.mxu0 0.0
        %265 = vmatpush1.msra.mxu0 %v231
        %266 = vmatprep.subr.mxu0 0.0
        %267 = vmatpush1.msra.mxu0 %v232
        %268 = vmatprep.subr.mxu0 0.0
        %269 = vmatpush1.msra.mxu0 %v233
        %270 = vmatprep.subr.mxu0 0.0
        %271 = vmatpush1.msra.mxu0 %v234
        %272 = vmatprep.subr.mxu0 0.0
        %273 = vmatpush1.msra.mxu0 %v235
        %274 = vmatprep.subr.mxu0 0.0
        %275 = vmatpush1.msra.mxu0 %v236
        %276 = vmatprep.subr.mxu0 0.0
        %277 = vmatpush1.msra.mxu0 0.0
        %278 = vmatprep.subr.mxu0 0.0
        %279 = vmatpush1.msra.mxu0 0.0
        %280 = vmatprep.subr.mxu0 0.0
        %281 = vmatpush1.msra.mxu0 0.0
        %282 = vmatprep.subr.mxu0 0.0
        %283 = vmatpush1.msra.mxu0 0.0
        %284 = vmatprep.subr.mxu0 0.0
        %285 = vmatpush1.msra.mxu0 0.0
        %286 = vmatprep.subr.mxu0 0.0
        %287 = vmatpush1.msra.mxu0 0.0
        %288 = vmatprep.subr.mxu0 0.0
        %289 = vmatpush1.msra.mxu0 0.0
        %290 = vmatprep.subr.mxu0 0.0
        %291 = vmatpush1.msra.mxu0 0.0
        %292 = vmatprep.subr.mxu0 0.0
        %293 = vmatpush1.msra.mxu0 0.0
        %294 = vmatprep.subr.mxu0 0.0
        %295 = vmatpush1.msra.mxu0 0.0
        %296 = vmatprep.subr.mxu0 0.0
        %297 = vmatpush1.msra.mxu0 0.0
        %298 = vmatprep.subr.mxu0 0.0
        %299 = vmatpush1.msra.mxu0 0.0
        %300 = vmatprep.subr.mxu0 0.0
        %301 = vmatpush1.msra.mxu0 0.0
        %302 = vmatprep.subr.mxu0 0.0
        %303 = vmatpush1.msra.mxu0 0.0
        %304 = vmatprep.subr.mxu0 0.0
        %305 = vmatpush1.msra.mxu0 0.0
        %306 = vmatprep.subr.mxu0 0.0
        %307 = vmatpush1.msra.mxu0 0.0
        %308 = vmatprep.mubr.f32.mxu0 0.0
        %309 = vmatmul.mubr.f32.gmra.mrb[0].mxu0 %v220
        %v310 = vpop.f32.mrb[0].mxu0
        %v311 = vadd.f32 %v242, %v310
        %v312 = vpop.f32.mrb[0].mxu0
        %313 = vdwg.mxu0
        %315 = vrot.lane.b32.xlu0 %v311, 96
        %v316 = vpop.permute.xlu0 %315
        %vm317 = vcmask 64512
        %v318 = vsel %vm317, %v311, 0
        %v320 = vsel %vm317, %v316, 0
        %322 = vmatprep.subr.mxu0 0.0
        %323 = vmatpush1.xpose.msra.mxu0 %v320
        %324 = vmatprep.subr.mxu0 0.0
        %325 = vmatpush1.xpose.msra.mxu0 0.0
        %326 = vmatprep.subr.mxu0 0.0
        %327 = vmatpush1.xpose.msra.mxu0 0.0
        %328 = vmatprep.subr.mxu0 0.0
        %329 = vmatpush1.xpose.msra.mxu0 0.0
        %330 = vmatprep.subr.mxu0 0.0
        %331 = vmatpush1.xpose.msra.mxu0 0.0
        %332 = vmatprep.subr.mxu0 0.0
        %333 = vmatpush1.xpose.msra.mxu0 0.0
        %334 = vmatprep.subr.mxu0 0.0
        %335 = vmatpush1.xpose.msra.mxu0 0.0
        %336 = vmatprep.subr.mxu0 0.0
        %337 = vmatpush1.xpose.msra.mxu0 0.0
        %338 = vmatprep.subr.mxu0 0.0
        %339 = vmatpush1.xpose.msra.mxu0 0.0
        %340 = vmatprep.subr.mxu0 0.0
        %341 = vmatpush1.xpose.msra.mxu0 0.0
        %342 = vmatprep.subr.mxu0 0.0
        %343 = vmatpush1.xpose.msra.mxu0 0.0
        %344 = vmatprep.subr.mxu0 0.0
        %345 = vmatpush1.xpose.msra.mxu0 0.0
        %346 = vmatprep.subr.mxu0 0.0
        %347 = vmatpush1.xpose.msra.mxu0 0.0
        %348 = vmatprep.subr.mxu0 0.0
        %349 = vmatpush1.xpose.msra.mxu0 0.0
        %350 = vmatprep.subr.mxu0 0.0
        %351 = vmatpush1.xpose.msra.mxu0 0.0
        %352 = vmatprep.subr.mxu0 0.0
        %353 = vmatpush1.xpose.msra.mxu0 0.0
        %354 = vmatprep.subr.mxu0 0.0
        %355 = vmatpush1.xpose.msra.mxu0 0.0
        %356 = vmatprep.subr.mxu0 0.0
        %357 = vmatpush1.xpose.msra.mxu0 0.0
        %358 = vmatprep.subr.mxu0 0.0
        %359 = vmatpush1.xpose.msra.mxu0 0.0
        %360 = vmatprep.subr.mxu0 0.0
        %361 = vmatpush1.xpose.msra.mxu0 0.0
        %362 = vmatprep.subr.mxu0 0.0
        %363 = vmatpush1.xpose.msra.mxu0 0.0
        %364 = vmatprep.subr.mxu0 0.0
        %365 = vmatpush1.xpose.msra.mxu0 0.0
        %366 = vmatprep.subr.mxu0 0.0
        %367 = vmatpush1.xpose.msra.mxu0 0.0
        %368 = vmatprep.subr.mxu0 0.0
        %369 = vmatpush1.xpose.msra.mxu0 0.0
        %370 = vmatprep.subr.mxu0 0.0
        %371 = vmatpush1.xpose.msra.mxu0 0.0
        %372 = vmatprep.subr.mxu0 0.0
        %373 = vmatpush1.xpose.msra.mxu0 0.0
        %374 = vmatprep.subr.mxu0 0.0
        %375 = vmatpush1.xpose.msra.mxu0 0.0
        %376 = vmatprep.subr.mxu0 0.0
        %377 = vmatpush1.xpose.msra.mxu0 0.0
        %378 = vmatprep.subr.mxu0 0.0
        %379 = vmatpush1.xpose.msra.mxu0 0.0
        %380 = vmatprep.subr.mxu0 0.0
        %381 = vmatpush1.xpose.msra.mxu0 0.0
        %382 = vmatprep.subr.mxu0 0.0
        %383 = vmatpush1.xpose.msra.mxu0 0.0
        %384 = vmatprep.subr.mxu0 0.0
        %385 = vmatpush1.xpose.msra.mxu0 0.0
        %386 = vmatprep.mubr.f32.mxu0 0.0
        %387 = vmatmul.mubr.f32.gmra.mrb[0].mxu0 %v318
        %v388 = vpop.f32.mrb[0].mxu0
        %v389 = vadd.f32 0.0, %v388
        %v390 = vpop.f32.mrb[0].mxu0
        %391 = vdwg.mxu0
        %v392 = vsel %vm317, %v389, -inf
        %393 = vmax.xlane.f32.xlu0 %v392
        %v394 = vpop.xlane.xlu0 %393
        %v395 = vsub.f32 %v389, %v394
        %v396 = vmul.f32 %v395, 1.442695
        %v397 = vpow.pop %v396
        %v398 = vsel %vm317, %v397, 0.0
        %399 = vadd.xlane.f32.xlu0 %v398
        %v400 = vpop.xlane.xlu0 %399
        %401 = vrot.lane.b32.xlu0 %v311, 64
        %v402 = vpop.permute.xlu0 %401
        %v405 = vsel %vm317, %v397, 0
        %407 = vmatprep.subr.mxu0 0.0
        %408 = vmatpush1.msra.mxu0 %v402
        %409 = vmatprep.subr.mxu0 0.0
        %410 = vmatpush1.msra.mxu0 0.0
        %411 = vmatprep.subr.mxu0 0.0
        %412 = vmatpush1.msra.mxu0 0.0
        %413 = vmatprep.subr.mxu0 0.0
        %414 = vmatpush1.msra.mxu0 0.0
        %415 = vmatprep.subr.mxu0 0.0
        %416 = vmatpush1.msra.mxu0 0.0
        %417 = vmatprep.subr.mxu0 0.0
        %418 = vmatpush1.msra.mxu0 0.0
        %419 = vmatprep.subr.mxu0 0.0
        %420 = vmatpush1.msra.mxu0 0.0
        %421 = vmatprep.subr.mxu0 0.0
        %422 = vmatpush1.msra.mxu0 0.0
        %423 = vmatprep.subr.mxu0 0.0
        %424 = vmatpush1.msra.mxu0 0.0
        %425 = vmatprep.subr.mxu0 0.0
        %426 = vmatpush1.msra.mxu0 0.0
        %427 = vmatprep.subr.mxu0 0.0
        %428 = vmatpush1.msra.mxu0 0.0
        %429 = vmatprep.subr.mxu0 0.0
        %430 = vmatpush1.msra.mxu0 0.0
        %431 = vmatprep.subr.mxu0 0.0
        %432 = vmatpush1.msra.mxu0 0.0
        %433 = vmatprep.subr.mxu0 0.0
        %434 = vmatpush1.msra.mxu0 0.0
        %435 = vmatprep.subr.mxu0 0.0
        %436 = vmatpush1.msra.mxu0 0.0
        %437 = vmatprep.subr.mxu0 0.0
        %438 = vmatpush1.msra.mxu0 0.0
        %439 = vmatprep.subr.mxu0 0.0
        %440 = vmatpush1.msra.mxu0 0.0
        %441 = vmatprep.subr.mxu0 0.0
        %442 = vmatpush1.msra.mxu0 0.0
        %443 = vmatprep.subr.mxu0 0.0
        %444 = vmatpush1.msra.mxu0 0.0
        %445 = vmatprep.subr.mxu0 0.0
        %446 = vmatpush1.msra.mxu0 0.0
        %447 = vmatprep.subr.mxu0 0.0
        %448 = vmatpush1.msra.mxu0 0.0
        %449 = vmatprep.subr.mxu0 0.0
        %450 = vmatpush1.msra.mxu0 0.0
        %451 = vmatprep.subr.mxu0 0.0
        %452 = vmatpush1.msra.mxu0 0.0
        %453 = vmatprep.subr.mxu0 0.0
        %454 = vmatpush1.msra.mxu0 0.0
        %455 = vmatprep.subr.mxu0 0.0
        %456 = vmatpush1.msra.mxu0 0.0
        %457 = vmatprep.subr.mxu0 0.0
        %458 = vmatpush1.msra.mxu0 0.0
        %459 = vmatprep.subr.mxu0 0.0
        %460 = vmatpush1.msra.mxu0 0.0
        %461 = vmatprep.subr.mxu0 0.0
        %462 = vmatpush1.msra.mxu0 0.0
        %463 = vmatprep.subr.mxu0 0.0
        %464 = vmatpush1.msra.mxu0 0.0
        %465 = vmatprep.subr.mxu0 0.0
        %466 = vmatpush1.msra.mxu0 0.0
        %467 = vmatprep.subr.mxu0 0.0
        %468 = vmatpush1.msra.mxu0 0.0
        %469 = vmatprep.subr.mxu0 0.0
        %470 = vmatpush1.msra.mxu0 0.0
        %471 = vmatprep.mubr.f32.mxu0 0.0
        %472 = vmatmul.mubr.f32.gmra.mrb[0].mxu0 %v405
        %v473 = vpop.f32.mrb[0].mxu0
        %v474 = vadd.f32 0.0, %v473
        %v475 = vpop.f32.mrb[0].mxu0
        %476 = vdwg.mxu0
        %v477 = vrcp.pop %v400
        %v478 = vmul.f32 %v474, %v477
        %479 = vrot.lane.b32.xlu0 %v311, 120
        %v480 = vpop.permute.xlu0 %479
        %481 = vrot.lane.b32.xlu0 %v311, 88
        %v482 = vpop.permute.xlu0 %481
        %v483 = vsel %vm317, %v480, 0
        %v485 = vsel %vm317, %v482, 0
        %487 = vmatprep.subr.mxu0 0.0
        %488 = vmatpush1.xpose.msra.mxu0 %v485
        %489 = vmatprep.subr.mxu0 0.0
        %490 = vmatpush1.xpose.msra.mxu0 0.0
        %491 = vmatprep.subr.mxu0 0.0
        %492 = vmatpush1.xpose.msra.mxu0 0.0
        %493 = vmatprep.subr.mxu0 0.0
        %494 = vmatpush1.xpose.msra.mxu0 0.0
        %495 = vmatprep.subr.mxu0 0.0
        %496 = vmatpush1.xpose.msra.mxu0 0.0
        %497 = vmatprep.subr.mxu0 0.0
        %498 = vmatpush1.xpose.msra.mxu0 0.0
        %499 = vmatprep.subr.mxu0 0.0
        %500 = vmatpush1.xpose.msra.mxu0 0.0
        %501 = vmatprep.subr.mxu0 0.0
        %502 = vmatpush1.xpose.msra.mxu0 0.0
        %503 = vmatprep.subr.mxu0 0.0
        %504 = vmatpush1.xpose.msra.mxu0 0.0
        %505 = vmatprep.subr.mxu0 0.0
        %506 = vmatpush1.xpose.msra.mxu0 0.0
        %507 = vmatprep.subr.mxu0 0.0
        %508 = vmatpush1.xpose.msra.mxu0 0.0
        %509 = vmatprep.subr.mxu0 0.0
        %510 = vmatpush1.xpose.msra.mxu0 0.0
        %511 = vmatprep.subr.mxu0 0.0
        %512 = vmatpush1.xpose.msra.mxu0 0.0
        %513 = vmatprep.subr.mxu0 0.0
        %514 = vmatpush1.xpose.msra.mxu0 0.0
        %515 = vmatprep.subr.mxu0 0.0
        %516 = vmatpush1.xpose.msra.mxu0 0.0
        %517 = vmatprep.subr.mxu0 0.0
        %518 = vmatpush1.xpose.msra.mxu0 0.0
        %519 = vmatprep.subr.mxu0 0.0
        %520 = vmatpush1.xpose.msra.mxu0 0.0
        %521 = vmatprep.subr.mxu0 0.0
        %522 = vmatpush1.xpose.msra.mxu0 0.0
        %523 = vmatprep.subr.mxu0 0.0
        %524 = vmatpush1.xpose.msra.mxu0 0.0
        %525 = vmatprep.subr.mxu0 0.0
        %526 = vmatpush1.xpose.msra.mxu0 0.0
        %527 = vmatprep.subr.mxu0 0.0
        %528 = vmatpush1.xpose.msra.mxu0 0.0
        %529 = vmatprep.subr.mxu0 0.0
        %530 = vmatpush1.xpose.msra.mxu0 0.0
        %531 = vmatprep.subr.mxu0 0.0
        %532 = vmatpush1.xpose.msra.mxu0 0.0
        %533 = vmatprep.subr.mxu0 0.0
        %534 = vmatpush1.xpose.msra.mxu0 0.0
        %535 = vmatprep.subr.mxu0 0.0
        %536 = vmatpush1.xpose.msra.mxu0 0.0
        %537 = vmatprep.subr.mxu0 0.0
        %538 = vmatpush1.xpose.msra.mxu0 0.0
        %539 = vmatprep.subr.mxu0 0.0
        %540 = vmatpush1.xpose.msra.mxu0 0.0
        %541 = vmatprep.subr.mxu0 0.0
        %542 = vmatpush1.xpose.msra.mxu0 0.0
        %543 = vmatprep.subr.mxu0 0.0
        %544 = vmatpush1.xpose.msra.mxu0 0.0
        %545 = vmatprep.subr.mxu0 0.0
        %546 = vmatpush1.xpose.msra.mxu0 0.0
        %547 = vmatprep.subr.mxu0 0.0
        %548 = vmatpush1.xpose.msra.mxu0 0.0
        %549 = vmatprep.subr.mxu0 0.0
        %550 = vmatpush1.xpose.msra.mxu0 0.0
        %551 = vmatprep.mubr.f32.mxu0 0.0
        %552 = vmatmul.mubr.f32.gmra.mrb[0].mxu0 %v483
        %v553 = vpop.f32.mrb[0].mxu0
        %v554 = vadd.f32 0.0, %v553
        %v555 = vpop.f32.mrb[0].mxu0
        %556 = vdwg.mxu0
        %v557 = vsel %vm317, %v554, -inf
        %558 = vmax.xlane.f32.xlu0 %v557
        %v559 = vpop.xlane.xlu0 %558
        %v560 = vsub.f32 %v554, %v559
        %v561 = vmul.f32 %v560, 1.442695
        %v562 = vpow.pop %v561
        %v563 = vsel %vm317, %v562, 0.0
        %564 = vadd.xlane.f32.xlu0 %v563
        %v565 = vpop.xlane.xlu0 %564
        %566 = vrot.lane.b32.xlu0 %v311, 56
        %v567 = vpop.permute.xlu0 %566
        %v570 = vsel %vm317, %v562, 0
        %572 = vmatprep.subr.mxu0 0.0
        %573 = vmatpush1.msra.mxu0 %v567
        %574 = vmatprep.subr.mxu0 0.0
        %575 = vmatpush1.msra.mxu0 0.0
        %576 = vmatprep.subr.mxu0 0.0
        %577 = vmatpush1.msra.mxu0 0.0
        %578 = vmatprep.subr.mxu0 0.0
        %579 = vmatpush1.msra.mxu0 0.0
        %580 = vmatprep.subr.mxu0 0.0
        %581 = vmatpush1.msra.mxu0 0.0
        %582 = vmatprep.subr.mxu0 0.0
        %583 = vmatpush1.msra.mxu0 0.0
        %584 = vmatprep.subr.mxu0 0.0
        %585 = vmatpush1.msra.mxu0 0.0
        %586 = vmatprep.subr.mxu0 0.0
        %587 = vmatpush1.msra.mxu0 0.0
        %588 = vmatprep.subr.mxu0 0.0
        %589 = vmatpush1.msra.mxu0 0.0
        %590 = vmatprep.subr.mxu0 0.0
        %591 = vmatpush1.msra.mxu0 0.0
        %592 = vmatprep.subr.mxu0 0.0
        %593 = vmatpush1.msra.mxu0 0.0
        %594 = vmatprep.subr.mxu0 0.0
        %595 = vmatpush1.msra.mxu0 0.0
        %596 = vmatprep.subr.mxu0 0.0
        %597 = vmatpush1.msra.mxu0 0.0
        %598 = vmatprep.subr.mxu0 0.0
        %599 = vmatpush1.msra.mxu0 0.0
        %600 = vmatprep.subr.mxu0 0.0
        %601 = vmatpush1.msra.mxu0 0.0
        %602 = vmatprep.subr.mxu0 0.0
        %603 = vmatpush1.msra.mxu0 0.0
        %604 = vmatprep.subr.mxu0 0.0
        %605 = vmatpush1.msra.mxu0 0.0
        %606 = vmatprep.subr.mxu0 0.0
        %607 = vmatpush1.msra.mxu0 0.0
        %608 = vmatprep.subr.mxu0 0.0
        %609 = vmatpush1.msra.mxu0 0.0
        %610 = vmatprep.subr.mxu0 0.0
        %611 = vmatpush1.msra.mxu0 0.0
        %612 = vmatprep.subr.mxu0 0.0
        %613 = vmatpush1.msra.mxu0 0.0
        %614 = vmatprep.subr.mxu0 0.0
        %615 = vmatpush1.msra.mxu0 0.0
        %616 = vmatprep.subr.mxu0 0.0
        %617 = vmatpush1.msra.mxu0 0.0
        %618 = vmatprep.subr.mxu0 0.0
        %619 = vmatpush1.msra.mxu0 0.0
        %620 = vmatprep.subr.mxu0 0.0
        %621 = vmatpush1.msra.mxu0 0.0
        %622 = vmatprep.subr.mxu0 0.0
        %623 = vmatpush1.msra.mxu0 0.0
        %624 = vmatprep.subr.mxu0 0.0
        %625 = vmatpush1.msra.mxu0 0.0
        %626 = vmatprep.subr.mxu0 0.0
        %627 = vmatpush1.msra.mxu0 0.0
        %628 = vmatprep.subr.mxu0 0.0
        %629 = vmatpush1.msra.mxu0 0.0
        %630 = vmatprep.subr.mxu0 0.0
        %631 = vmatpush1.msra.mxu0 0.0
        %632 = vmatprep.subr.mxu0 0.0
        %633 = vmatpush1.msra.mxu0 0.0
        %634 = vmatprep.subr.mxu0 0.0
        %635 = vmatpush1.msra.mxu0 0.0
        %636 = vmatprep.mubr.f32.mxu0 0.0
        %637 = vmatmul.mubr.f32.gmra.mrb[0].mxu0 %v570
        %v638 = vpop.f32.mrb[0].mxu0
        %v639 = vadd.f32 0.0, %v638
        %v640 = vpop.f32.mrb[0].mxu0
        %641 = vdwg.mxu0
        %v642 = vrcp.pop %v565
        %v643 = vmul.f32 %v639, %v642
        %644 = vrot.lane.b32.xlu0 %v311, 112
        %v645 = vpop.permute.xlu0 %644
        %646 = vrot.lane.b32.xlu0 %v311, 80
        %v647 = vpop.permute.xlu0 %646
        %v648 = vsel %vm317, %v645, 0
        %v650 = vsel %vm317, %v647, 0
        %652 = vmatprep.subr.mxu0 0.0
        %653 = vmatpush1.xpose.msra.mxu0 %v650
        %654 = vmatprep.subr.mxu0 0.0
        %655 = vmatpush1.xpose.msra.mxu0 0.0
        %656 = vmatprep.subr.mxu0 0.0
        %657 = vmatpush1.xpose.msra.mxu0 0.0
        %658 = vmatprep.subr.mxu0 0.0
        %659 = vmatpush1.xpose.msra.mxu0 0.0
        %660 = vmatprep.subr.mxu0 0.0
        %661 = vmatpush1.xpose.msra.mxu0 0.0
        %662 = vmatprep.subr.mxu0 0.0
        %663 = vmatpush1.xpose.msra.mxu0 0.0
        %664 = vmatprep.subr.mxu0 0.0
        %665 = vmatpush1.xpose.msra.mxu0 0.0
        %666 = vmatprep.subr.mxu0 0.0
        %667 = vmatpush1.xpose.msra.mxu0 0.0
        %668 = vmatprep.subr.mxu0 0.0
        %669 = vmatpush1.xpose.msra.mxu0 0.0
        %670 = vmatprep.subr.mxu0 0.0
        %671 = vmatpush1.xpose.msra.mxu0 0.0
        %672 = vmatprep.subr.mxu0 0.0
        %673 = vmatpush1.xpose.msra.mxu0 0.0
        %674 = vmatprep.subr.mxu0 0.0
        %675 = vmatpush1.xpose.msra.mxu0 0.0
        %676 = vmatprep.subr.mxu0 0.0
        %677 = vmatpush1.xpose.msra.mxu0 0.0
        %678 = vmatprep.subr.mxu0 0.0
        %679 = vmatpush1.xpose.msra.mxu0 0.0
        %680 = vmatprep.subr.mxu0 0.0
        %681 = vmatpush1.xpose.msra.mxu0 0.0
        %682 = vmatprep.subr.mxu0 0.0
        %683 = vmatpush1.xpose.msra.mxu0 0.0
        %684 = vmatprep.subr.mxu0 0.0
        %685 = vmatpush1.xpose.msra.mxu0 0.0
        %686 = vmatprep.subr.mxu0 0.0
        %687 = vmatpush1.xpose.msra.mxu0 0.0
        %688 = vmatprep.subr.mxu0 0.0
        %689 = vmatpush1.xpose.msra.mxu0 0.0
        %690 = vmatprep.subr.mxu0 0.0
        %691 = vmatpush1.xpose.msra.mxu0 0.0
        %692 = vmatprep.subr.mxu0 0.0
        %693 = vmatpush1.xpose.msra.mxu0 0.0
        %694 = vmatprep.subr.mxu0 0.0
        %695 = vmatpush1.xpose.msra.mxu0 0.0
        %696 = vmatprep.subr.mxu0 0.0
        %697 = vmatpush1.xpose.msra.mxu0 0.0
        %698 = vmatprep.subr.mxu0 0.0
        %699 = vmatpush1.xpose.msra.mxu0 0.0
        %700 = vmatprep.subr.mxu0 0.0
        %701 = vmatpush1.xpose.msra.mxu0 0.0
        %702 = vmatprep.subr.mxu0 0.0
        %703 = vmatpush1.xpose.msra.mxu0 0.0
        %704 = vmatprep.subr.mxu0 0.0
        %705 = vmatpush1.xpose.msra.mxu0 0.0
        %706 = vmatprep.subr.mxu0 0.0
        %707 = vmatpush1.xpose.msra.mxu0 0.0
        %708 = vmatprep.subr.mxu0 0.0
        %709 = vmatpush1.xpose.msra.mxu0 0.0
        %710 = vmatprep.subr.mxu0 0.0
        %711 = vmatpush1.xpose.msra.mxu0 0.0
        %712 = vmatprep.subr.mxu0 0.0
        %713 = vmatpush1.xpose.msra.mxu0 0.0
        %714 = vmatprep.subr.mxu0 0.0
        %715 = vmatpush1.xpose.msra.mxu0 0.0
        %716 = vmatprep.mubr.f32.mxu0 0.0
        %717 = vmatmul.mubr.f32.gmra.mrb[0].mxu0 %v648
        %v718 = vpop.f32.mrb[0].mxu0
        %v719 = vadd.f32 0.0, %v718
        %v720 = vpop.f32.mrb[0].mxu0
        %721 = vdwg.mxu0
        %v722 = vsel %vm317, %v719, -inf
        %723 = vmax.xlane.f32.xlu0 %v722
        %v724 = vpop.xlane.xlu0 %723
        %v725 = vsub.f32 %v719, %v724
        %v726 = vmul.f32 %v725, 1.442695
        %v727 = vpow.pop %v726
        %v728 = vsel %vm317, %v727, 0.0
        %729 = vadd.xlane.f32.xlu0 %v728
        %v730 = vpop.xlane.xlu0 %729
        %731 = vrot.lane.b32.xlu0 %v311, 48
        %v732 = vpop.permute.xlu0 %731
        %v735 = vsel %vm317, %v727, 0
        %737 = vmatprep.subr.mxu0 0.0
        %738 = vmatpush1.msra.mxu0 %v732
        %739 = vmatprep.subr.mxu0 0.0
        %740 = vmatpush1.msra.mxu0 0.0
        %741 = vmatprep.subr.mxu0 0.0
        %742 = vmatpush1.msra.mxu0 0.0
        %743 = vmatprep.subr.mxu0 0.0
        %744 = vmatpush1.msra.mxu0 0.0
        %745 = vmatprep.subr.mxu0 0.0
        %746 = vmatpush1.msra.mxu0 0.0
        %747 = vmatprep.subr.mxu0 0.0
        %748 = vmatpush1.msra.mxu0 0.0
        %749 = vmatprep.subr.mxu0 0.0
        %750 = vmatpush1.msra.mxu0 0.0
        %751 = vmatprep.subr.mxu0 0.0
        %752 = vmatpush1.msra.mxu0 0.0
        %753 = vmatprep.subr.mxu0 0.0
        %754 = vmatpush1.msra.mxu0 0.0
        %755 = vmatprep.subr.mxu0 0.0
        %756 = vmatpush1.msra.mxu0 0.0
        %757 = vmatprep.subr.mxu0 0.0
        %758 = vmatpush1.msra.mxu0 0.0
        %759 = vmatprep.subr.mxu0 0.0
        %760 = vmatpush1.msra.mxu0 0.0
        %761 = vmatprep.subr.mxu0 0.0
        %762 = vmatpush1.msra.mxu0 0.0
        %763 = vmatprep.subr.mxu0 0.0
        %764 = vmatpush1.msra.mxu0 0.0
        %765 = vmatprep.subr.mxu0 0.0
        %766 = vmatpush1.msra.mxu0 0.0
        %767 = vmatprep.subr.mxu0 0.0
        %768 = vmatpush1.msra.mxu0 0.0
        %769 = vmatprep.subr.mxu0 0.0
        %770 = vmatpush1.msra.mxu0 0.0
        %771 = vmatprep.subr.mxu0 0.0
        %772 = vmatpush1.msra.mxu0 0.0
        %773 = vmatprep.subr.mxu0 0.0
        %774 = vmatpush1.msra.mxu0 0.0
        %775 = vmatprep.subr.mxu0 0.0
        %776 = vmatpush1.msra.mxu0 0.0
        %777 = vmatprep.subr.mxu0 0.0
        %778 = vmatpush1.msra.mxu0 0.0
        %779 = vmatprep.subr.mxu0 0.0
        %780 = vmatpush1.msra.mxu0 0.0
        %781 = vmatprep.subr.mxu0 0.0
        %782 = vmatpush1.msra.mxu0 0.0
        %783 = vmatprep.subr.mxu0 0.0
        %784 = vmatpush1.msra.mxu0 0.0
        %785 = vmatprep.subr.mxu0 0.0
        %786 = vmatpush1.msra.mxu0 0.0
        %787 = vmatprep.subr.mxu0 0.0
        %788 = vmatpush1.msra.mxu0 0.0
        %789 = vmatprep.subr.mxu0 0.0
        %790 = vmatpush1.msra.mxu0 0.0
        %791 = vmatprep.subr.mxu0 0.0
        %792 = vmatpush1.msra.mxu0 0.0
        %793 = vmatprep.subr.mxu0 0.0
        %794 = vmatpush1.msra.mxu0 0.0
        %795 = vmatprep.subr.mxu0 0.0
        %796 = vmatpush1.msra.mxu0 0.0
        %797 = vmatprep.subr.mxu0 0.0
        %798 = vmatpush1.msra.mxu0 0.0
        %799 = vmatprep.subr.mxu0 0.0
        %800 = vmatpush1.msra.mxu0 0.0
        %801 = vmatprep.mubr.f32.mxu0 0.0
        %802 = vmatmul.mubr.f32.gmra.mrb[0].mxu0 %v735
        %v803 = vpop.f32.mrb[0].mxu0
        %v804 = vadd.f32 0.0, %v803
        %v805 = vpop.f32.mrb[0].mxu0
        %806 = vdwg.mxu0
        %v807 = vrcp.pop %v730
        %v808 = vmul.f32 %v804, %v807
        %809 = vrot.lane.b32.xlu0 %v311, 104
        %v810 = vpop.permute.xlu0 %809
        %811 = vrot.lane.b32.xlu0 %v311, 72
        %v812 = vpop.permute.xlu0 %811
        %v813 = vsel %vm317, %v810, 0
        %v815 = vsel %vm317, %v812, 0
        %817 = vmatprep.subr.mxu0 0.0
        %818 = vmatpush1.xpose.msra.mxu0 %v815
        %819 = vmatprep.subr.mxu0 0.0
        %820 = vmatpush1.xpose.msra.mxu0 0.0
        %821 = vmatprep.subr.mxu0 0.0
        %822 = vmatpush1.xpose.msra.mxu0 0.0
        %823 = vmatprep.subr.mxu0 0.0
        %824 = vmatpush1.xpose.msra.mxu0 0.0
        %825 = vmatprep.subr.mxu0 0.0
        %826 = vmatpush1.xpose.msra.mxu0 0.0
        %827 = vmatprep.subr.mxu0 0.0
        %828 = vmatpush1.xpose.msra.mxu0 0.0
        %829 = vmatprep.subr.mxu0 0.0
        %830 = vmatpush1.xpose.msra.mxu0 0.0
        %831 = vmatprep.subr.mxu0 0.0
        %832 = vmatpush1.xpose.msra.mxu0 0.0
        %833 = vmatprep.subr.mxu0 0.0
        %834 = vmatpush1.xpose.msra.mxu0 0.0
        %835 = vmatprep.subr.mxu0 0.0
        %836 = vmatpush1.xpose.msra.mxu0 0.0
        %837 = vmatprep.subr.mxu0 0.0
        %838 = vmatpush1.xpose.msra.mxu0 0.0
        %839 = vmatprep.subr.mxu0 0.0
        %840 = vmatpush1.xpose.msra.mxu0 0.0
        %841 = vmatprep.subr.mxu0 0.0
        %842 = vmatpush1.xpose.msra.mxu0 0.0
        %843 = vmatprep.subr.mxu0 0.0
        %844 = vmatpush1.xpose.msra.mxu0 0.0
        %845 = vmatprep.subr.mxu0 0.0
        %846 = vmatpush1.xpose.msra.mxu0 0.0
        %847 = vmatprep.subr.mxu0 0.0
        %848 = vmatpush1.xpose.msra.mxu0 0.0
        %849 = vmatprep.subr.mxu0 0.0
        %850 = vmatpush1.xpose.msra.mxu0 0.0
        %851 = vmatprep.subr.mxu0 0.0
        %852 = vmatpush1.xpose.msra.mxu0 0.0
        %853 = vmatprep.subr.mxu0 0.0
        %854 = vmatpush1.xpose.msra.mxu0 0.0
        %855 = vmatprep.subr.mxu0 0.0
        %856 = vmatpush1.xpose.msra.mxu0 0.0
        %857 = vmatprep.subr.mxu0 0.0
        %858 = vmatpush1.xpose.msra.mxu0 0.0
        %859 = vmatprep.subr.mxu0 0.0
        %860 = vmatpush1.xpose.msra.mxu0 0.0
        %861 = vmatprep.subr.mxu0 0.0
        %862 = vmatpush1.xpose.msra.mxu0 0.0
        %863 = vmatprep.subr.mxu0 0.0
        %864 = vmatpush1.xpose.msra.mxu0 0.0
        %865 = vmatprep.subr.mxu0 0.0
        %866 = vmatpush1.xpose.msra.mxu0 0.0
        %867 = vmatprep.subr.mxu0 0.0
        %868 = vmatpush1.xpose.msra.mxu0 0.0
        %869 = vmatprep.subr.mxu0 0.0
        %870 = vmatpush1.xpose.msra.mxu0 0.0
        %871 = vmatprep.subr.mxu0 0.0
        %872 = vmatpush1.xpose.msra.mxu0 0.0
        %873 = vmatprep.subr.mxu0 0.0
        %874 = vmatpush1.xpose.msra.mxu0 0.0
        %875 = vmatprep.subr.mxu0 0.0
        %876 = vmatpush1.xpose.msra.mxu0 0.0
        %877 = vmatprep.subr.mxu0 0.0
        %878 = vmatpush1.xpose.msra.mxu0 0.0
        %879 = vmatprep.subr.mxu0 0.0
        %880 = vmatpush1.xpose.msra.mxu0 0.0
        %881 = vmatprep.mubr.f32.mxu0 0.0
        %882 = vmatmul.mubr.f32.gmra.mrb[0].mxu0 %v813
        %v883 = vpop.f32.mrb[0].mxu0
        %v884 = vadd.f32 0.0, %v883
        %v885 = vpop.f32.mrb[0].mxu0
        %886 = vdwg.mxu0
        %v887 = vsel %vm317, %v884, -inf
        %888 = vmax.xlane.f32.xlu0 %v887
        %v889 = vpop.xlane.xlu0 %888
        %v890 = vsub.f32 %v884, %v889
        %v891 = vmul.f32 %v890, 1.442695
        %v892 = vpow.pop %v891
        %v893 = vsel %vm317, %v892, 0.0
        %894 = vadd.xlane.f32.xlu0 %v893
        %v895 = vpop.xlane.xlu0 %894
        %896 = vrot.lane.b32.xlu0 %v311, 40
        %v897 = vpop.permute.xlu0 %896
        %v900 = vsel %vm317, %v892, 0
        %902 = vmatprep.subr.mxu0 0.0
        %903 = vmatpush1.msra.mxu0 %v897
        %904 = vmatprep.subr.mxu0 0.0
        %905 = vmatpush1.msra.mxu0 0.0
        %906 = vmatprep.subr.mxu0 0.0
        %907 = vmatpush1.msra.mxu0 0.0
        %908 = vmatprep.subr.mxu0 0.0
        %909 = vmatpush1.msra.mxu0 0.0
        %910 = vmatprep.subr.mxu0 0.0
        %911 = vmatpush1.msra.mxu0 0.0
        %912 = vmatprep.subr.mxu0 0.0
        %913 = vmatpush1.msra.mxu0 0.0
        %914 = vmatprep.subr.mxu0 0.0
        %915 = vmatpush1.msra.mxu0 0.0
        %916 = vmatprep.subr.mxu0 0.0
        %917 = vmatpush1.msra.mxu0 0.0
        %918 = vmatprep.subr.mxu0 0.0
        %919 = vmatpush1.msra.mxu0 0.0
        %920 = vmatprep.subr.mxu0 0.0
        %921 = vmatpush1.msra.mxu0 0.0
        %922 = vmatprep.subr.mxu0 0.0
        %923 = vmatpush1.msra.mxu0 0.0
        %924 = vmatprep.subr.mxu0 0.0
        %925 = vmatpush1.msra.mxu0 0.0
        %926 = vmatprep.subr.mxu0 0.0
        %927 = vmatpush1.msra.mxu0 0.0
        %928 = vmatprep.subr.mxu0 0.0
        %929 = vmatpush1.msra.mxu0 0.0
        %930 = vmatprep.subr.mxu0 0.0
        %931 = vmatpush1.msra.mxu0 0.0
        %932 = vmatprep.subr.mxu0 0.0
        %933 = vmatpush1.msra.mxu0 0.0
        %934 = vmatprep.subr.mxu0 0.0
        %935 = vmatpush1.msra.mxu0 0.0
        %936 = vmatprep.subr.mxu0 0.0
        %937 = vmatpush1.msra.mxu0 0.0
        %938 = vmatprep.subr.mxu0 0.0
        %939 = vmatpush1.msra.mxu0 0.0
        %940 = vmatprep.subr.mxu0 0.0
        %941 = vmatpush1.msra.mxu0 0.0
        %942 = vmatprep.subr.mxu0 0.0
        %943 = vmatpush1.msra.mxu0 0.0
        %944 = vmatprep.subr.mxu0 0.0
        %945 = vmatpush1.msra.mxu0 0.0
        %946 = vmatprep.subr.mxu0 0.0
        %947 = vmatpush1.msra.mxu0 0.0
        %948 = vmatprep.subr.mxu0 0.0
        %949 = vmatpush1.msra.mxu0 0.0
        %950 = vmatprep.subr.mxu0 0.0
        %951 = vmatpush1.msra.mxu0 0.0
        %952 = vmatprep.subr.mxu0 0.0
        %953 = vmatpush1.msra.mxu0 0.0
        %954 = vmatprep.subr.mxu0 0.0
        %955 = vmatpush1.msra.mxu0 0.0
        %956 = vmatprep.subr.mxu0 0.0
        %957 = vmatpush1.msra.mxu0 0.0
        %958 = vmatprep.subr.mxu0 0.0
        %959 = vmatpush1.msra.mxu0 0.0
        %960 = vmatprep.subr.mxu0 0.0
        %961 = vmatpush1.msra.mxu0 0.0
        %962 = vmatprep.subr.mxu0 0.0
        %963 = vmatpush1.msra.mxu0 0.0
        %964 = vmatprep.subr.mxu0 0.0
        %965 = vmatpush1.msra.mxu0 0.0
        %966 = vmatprep.mubr.f32.mxu0 0.0
        %967 = vmatmul.mubr.f32.gmra.mrb[0].mxu0 %v900
        %v968 = vpop.f32.mrb[0].mxu0
        %v969 = vadd.f32 0.0, %v968
        %v970 = vpop.f32.mrb[0].mxu0
        %971 = vdwg.mxu0
        %v972 = vrcp.pop %v895
        %v973 = vmul.f32 %v969, %v972
        %975 = vrot.lane.b32.xlu0 %v643, 8
        %v976 = vpop.permute.xlu0 %975
        %979 = vrot.lane.b32.xlu0 %v808, 16
        %v980 = vpop.permute.xlu0 %979
        %983 = vrot.lane.b32.xlu0 %v973, 24
        %v984 = vpop.permute.xlu0 %983
        %v986 = vsel %vm317, %v478, %v976
        %vm987 = vcmask 130048
        %v988 = vsel %vm987, %v986, %v980
        %vm989 = vcmask 195584
        %v990 = vsel %vm989, %v988, %v984
        %v991 = vld [vmem:[%s3] sm:$0xff]
        %v992 = vld [vmem:[%s3 + $0x8] sm:$0xff]
        %v993 = vld [vmem:[%s3 + $0x10] sm:$0xff]
        %v994 = vld [vmem:[%s3 + $0x18] sm:$0xff]
        %v995 = vld [vmem:[%s4] sm:$0x1]
        %v997 = vlaneseq
        %v998 = vshrl.u32 %v997, 7
        %v999 = vsub.s32 0, %v998
        %v1000 = vrot.slane %v995, %v999
        %vm1002 = vcmask 261120
        %v1004 = vsel %vm1002, %v990, 0
        %1006 = vmatprep.subr.mxu0 0.0
        %1007 = vmatpush1.msra.mxu0 %v991
        %1008 = vmatprep.subr.mxu0 0.0
        %1009 = vmatpush1.msra.mxu0 %v992
        %1010 = vmatprep.subr.mxu0 0.0
        %1011 = vmatpush1.msra.mxu0 %v993
        %1012 = vmatprep.subr.mxu0 0.0
        %1013 = vmatpush1.msra.mxu0 %v994
        %1014 = vmatprep.subr.mxu0 0.0
        %1015 = vmatpush1.msra.mxu0 0.0
        %1016 = vmatprep.subr.mxu0 0.0
        %1017 = vmatpush1.msra.mxu0 0.0
        %1018 = vmatprep.subr.mxu0 0.0
        %1019 = vmatpush1.msra.mxu0 0.0
        %1020 = vmatprep.subr.mxu0 0.0
        %1021 = vmatpush1.msra.mxu0 0.0
        %1022 = vmatprep.subr.mxu0 0.0
        %1023 = vmatpush1.msra.mxu0 0.0
        %1024 = vmatprep.subr.mxu0 0.0
        %1025 = vmatpush1.msra.mxu0 0.0
        %1026 = vmatprep.subr.mxu0 0.0
        %1027 = vmatpush1.msra.mxu0 0.0
        %1028 = vmatprep.subr.mxu0 0.0
        %1029 = vmatpush1.msra.mxu0 0.0
        %1030 = vmatprep.subr.mxu0 0.0
        %1031 = vmatpush1.msra.mxu0 0.0
        %1032 = vmatprep.subr.mxu0 0.0
        %1033 = vmatpush1.msra.mxu0 0.0
        %1034 = vmatprep.subr.mxu0 0.0
        %1035 = vmatpush1.msra.mxu0 0.0
        %1036 = vmatprep.subr.mxu0 0.0
        %1037 = vmatpush1.msra.mxu0 0.0
        %1038 = vmatprep.subr.mxu0 0.0
        %1039 = vmatpush1.msra.mxu0 0.0
        %1040 = vmatprep.subr.mxu0 0.0
        %1041 = vmatpush1.msra.mxu0 0.0
        %1042 = vmatprep.subr.mxu0 0.0
        %1043 = vmatpush1.msra.mxu0 0.0
        %1044 = vmatprep.subr.mxu0 0.0
        %1045 = vmatpush1.msra.mxu0 0.0
        %1046 = vmatprep.subr.mxu0 0.0
        %1047 = vmatpush1.msra.mxu0 0.0
        %1048 = vmatprep.subr.mxu0 0.0
        %1049 = vmatpush1.msra.mxu0 0.0
        %1050 = vmatprep.subr.mxu0 0.0
        %1051 = vmatpush1.msra.mxu0 0.0
        %1052 = vmatprep.subr.mxu0 0.0
        %1053 = vmatpush1.msra.mxu0 0.0
        %1054 = vmatprep.subr.mxu0 0.0
        %1055 = vmatpush1.msra.mxu0 0.0
        %1056 = vmatprep.subr.mxu0 0.0
        %1057 = vmatpush1.msra.mxu0 0.0
        %1058 = vmatprep.subr.mxu0 0.0
        %1059 = vmatpush1.msra.mxu0 0.0
        %1060 = vmatprep.subr.mxu0 0.0
        %1061 = vmatpush1.msra.mxu0 0.0
        %1062 = vmatprep.subr.mxu0 0.0
        %1063 = vmatpush1.msra.mxu0 0.0
        %1064 = vmatprep.subr.mxu0 0.0
        %1065 = vmatpush1.msra.mxu0 0.0
        %1066 = vmatprep.subr.mxu0 0.0
        %1067 = vmatpush1.msra.mxu0 0.0
        %1068 = vmatprep.subr.mxu0 0.0
        %1069 = vmatpush1.msra.mxu0 0.0
        %1070 = vmatprep.mubr.f32.mxu0 0.0
        %1071 = vmatmul.mubr.f32.gmra.mrb[0].mxu0 %v1004
        %v1072 = vpop.f32.mrb[0].mxu0
        %v1073 = vadd.f32 %v1000, %v1072
        %v1074 = vpop.f32.mrb[0].mxu0
        %1075 = vdwg.mxu0
        %1076 = vst [vmem:[%s215] sm:$0xff] %v1073
        %s1077 = sand.u32 %s137, 1
        %s1078 = scalar_lea.sflag [#allocation3], %s1077
        %s1079 = sand.u32 %s137, 1
        %s1080 = smul.addr %s1079, 8
        %s1081 = scalar_lea.vmem [#allocation2], %s1080
        // Predicated region
        $region41: #{tpu_custom_call.1} parent=39 // pred_check
          %p1082 = pneg %p147
        $region42: #{tpu_custom_call.1} parent=39 // pred_check_branch
          %1084 = sbr.rel (%p1082) target = $region44
        $region43: #{tpu_custom_call.1} parent=39 // pred_region
          %s1086 = ssub.s32 128, 128
          %1087 = vsyncadd %s1078, %s1086
          %s1088 = smul.addr %s19, 128
          %s1089 = scalar_lea.hbm %s5, %s1088
          %s1091 = sshll.u32 %s1081, 4
          %s1092 = int_to_ptr.vmem [resolvable:$true] %s1091
          %1094 = dma.vmem_to_hbm [thread:$0]  %s1092, 128, %s1089, %s1078
        $region44: #{tpu_custom_call.1} parent=39 // pred_fallthru
          _
      $region40: #{tpu_custom_call.1} parent=5 // pred_fallthru
        _
      %p1095 = scmp.le.s32.totalorder 2, %s14
      // Predicated region
      $region45: #{tpu_custom_call.1} parent=5 // pred_check
        %p1096 = pneg %p1095
      $region46: #{tpu_custom_call.1} parent=5 // pred_check_branch
        %1098 = sbr.rel (%p1096) target = $region48
      $region47: #{tpu_custom_call.1} parent=5 // pred_region
        %s1099 = ssub.s32 %s14, 2
        // Predicated region
        $region49: #{tpu_custom_call.1} parent=47 // pred_check
          %p1100 = pneg %p153
        $region50: #{tpu_custom_call.1} parent=47 // pred_check_branch
          %1102 = sbr.rel (%p1100) target = $region52
        $region51: #{tpu_custom_call.1} parent=47 // pred_region
          %s1103 = sand.u32 %s138, 1
          %s1104 = scalar_lea.sflag [#allocation3], %s1103
          %s1105 = sand.u32 %s138, 1
          %s1106 = smul.addr %s1105, 8
          %s1107 = scalar_lea.vmem [#allocation2], %s1106
          %1108 = dma.done %s1104, 128
        $region52: #{tpu_custom_call.1} parent=47 // pred_fallthru
          _
      $region48: #{tpu_custom_call.1} parent=5 // pred_fallthru
        _
    $region6: #{tpu_custom_call.1} parent=1 // loop_footer
      %s18 = sadd.s32 1, %s14
    $region7: #{tpu_custom_call.1} parent=1 // loop_footer_branch
      %13 = sbr.rel target = $region3
    $region8: #{tpu_custom_call.1} parent=1 // loop_exit
      _
    %1109 = vsyncpa [#allocation3], 1
    %s1110 = scalar_lea.sflag [#allocation3], 1
    %1111 = vsyncpa %s1110, 1

</llo_original>
